<compile_context>
chip_gen: v7x
topology: tpu7x:2x2x1
jax: 0.10.0
libtpu: 0.0.40
codegen_flags: <defaults>
</compile_context>

<pallas_src>
import math

import jax
import jax.numpy as jnp
from jax.experimental import pallas as pl
from jax.experimental.pallas import tpu as pltpu


def _cdiv(a: int, b: int) -> int:
    return -(-a // b)


def _round_up(x: int, n: int) -> int:
    return ((x + n - 1) // n) * n


def _make_f1_kernel(logit_threshold: float):
    def f1_kernel(pred_ref, true_ref, out_ref, acc_ref):
        # pred_ref / true_ref: (tile_r, LANES) blocks in VMEM (native dtype).
        # out_ref: (3, LANES) per-split partial sums.  acc_ref: (3, LANES) f32.
        j = pl.program_id(1)

        @pl.when(j == 0)
        def _init():
            acc_ref[...] = jnp.zeros_like(acc_ref)

        # Hard predictions without the sigmoid/EUP:
        #   sigmoid(x) > threshold  <=>  x > logit(threshold)   (monotone).
        p = (pred_ref[...] > logit_threshold).astype(jnp.float32)
        t = true_ref[...].astype(jnp.float32)

        # Lane-wise partial sums: only the sublane axis is reduced per tile;
        # the cross-lane reduction is deferred out of the hot loop.
        acc_ref[0:1, :] += jnp.sum(p * t, axis=0, keepdims=True)  # tp
        acc_ref[1:2, :] += jnp.sum(p, axis=0, keepdims=True)      # sum(pred)
        acc_ref[2:3, :] += jnp.sum(t, axis=0, keepdims=True)      # sum(true)

        @pl.when(j == pl.num_programs(1) - 1)
        def _finalize():
            out_ref[...] = acc_ref[...]

    return f1_kernel


def f1_score(y_pred, y_true, num_classes: int = 1, epsilon: float = 1e-07,
             threshold: float = 0.5, *, lanes: int = 512,
             max_tile_rows: int = 256):
    """F1Score.forward for the binary (num_classes == 1) case.

    y_pred, y_true: (N, C, H, W) arrays (NCHW, matching the PyTorch module).
    Returns a scalar float32.
    """
    if num_classes != 1:
        # TODO(synk): multi-class path (softmax over dim=1 + one_hot(y_true)) not implemented.
        raise NotImplementedError("only num_classes=1 is implemented")
    if not (0.0 < threshold < 1.0):
        raise ValueError("threshold must be in (0, 1)")

    # sigmoid(x) > threshold  <=>  x > logit(threshold); computed at trace time.
    logit_threshold = float(math.log(threshold / (1.0 - threshold)))

    m = 1
    for d in y_pred.shape:
        m *= int(d)

    # C == 1 => flattening is a contiguous reshape (no transpose / extra HBM pass).
    pred_flat = jnp.reshape(y_pred, (m,))
    true_flat = jnp.reshape(y_true, (m,))
    # Keep native dtype through the DMA; cast inside the kernel.
    if not jnp.issubdtype(pred_flat.dtype, jnp.floating):
        pred_flat = pred_flat.astype(jnp.float32)
    if not jnp.issubdtype(true_flat.dtype, jnp.floating):
        true_flat = true_flat.astype(jnp.float32)

    # Dense (rows, lanes) layout, tiled along rows.
    rows = _cdiv(m, lanes)
    tile_r = _round_up(min(int(max_tile_rows), _round_up(max(rows, 1), 8)), 8)
    tiles = _cdiv(rows, tile_r)
    n_splits = 2 if tiles >= 2 else 1          # v7x: one split per TensorCore.
    tiles_per_split = _cdiv(tiles, n_splits)
    rows_padded = n_splits * tiles_per_split * tile_r
    pad = rows_padded * lanes - m

    # Padding contributes nothing: pred -> -inf (=> p == 0), true -> 0.
    pred_pad = jnp.pad(pred_flat, (0, pad), constant_values=float("-inf"))
    true_pad = jnp.pad(true_flat, (0, pad), constant_values=0)
    pred3d = pred_pad.reshape(n_splits, tiles_per_split * tile_r, lanes)
    true3d = true_pad.reshape(n_splits, tiles_per_split * tile_r, lanes)

    kernel = _make_f1_kernel(logit_threshold)
    in_spec = pl.BlockSpec((None, tile_r, lanes), lambda i, j: (i, j, 0))
    partials = pl.pallas_call(
        kernel,
        out_shape=jax.ShapeDtypeStruct((n_splits, 3, lanes), jnp.float32),
        grid=(n_splits, tiles_per_split),
        in_specs=[in_spec, in_spec],
        out_specs=pl.BlockSpec((None, 3, lanes), lambda i, j: (i, 0, 0)),
        scratch_shapes=[pltpu.VMEM((3, lanes), jnp.float32)],
        compiler_params=pltpu.CompilerParams(
            dimension_semantics=("parallel", "arbitrary")),
    )(pred3d, true3d)

    # Tiny scalar combine (algebraically identical to the reference, since
    # 2*tp + fp + fn == sum(pred) + sum(true)).
    tp = jnp.sum(partials[:, 0, :])
    sum_p = jnp.sum(partials[:, 1, :])
    sum_t = jnp.sum(partials[:, 2, :])
    f1 = 2.0 * tp / (sum_p + sum_t + jnp.float32(epsilon))
    return f1 / jnp.float32(num_classes)


def _f1_score_ref(y_pred, y_true, num_classes=1, epsilon=1e-07, threshold=0.5):
    """Pure-JAX reference mirroring the PyTorch module (binary path)."""
    p = jax.nn.sigmoid(y_pred.astype(jnp.float32))
    p = (p > threshold).astype(jnp.float32)
    t = y_true.astype(jnp.float32)
    axis = (0, 2, 3)
    tp = jnp.sum(p * t, axis=axis)
    fp = jnp.sum(p * (1.0 - t), axis=axis)
    fn = jnp.sum((1.0 - p) * t, axis=axis)
    f1 = 2.0 * tp / (2.0 * tp + fp + fn + epsilon)
    return jnp.sum(f1) / num_classes


if __name__ == "__main__":
    key = jax.random.PRNGKey(0)
    k1, k2, k3, k4 = jax.random.split(key, 4)

    # Case 1: tiny NCHW input (exercises the padded single-tile path).
    y_pred = jax.random.normal(k1, (2, 1, 16, 16), dtype=jnp.float32)
    y_true = (jax.random.uniform(k2, (2, 1, 16, 16)) > 0.5).astype(jnp.float32)
    out = jax.block_until_ready(f1_score(y_pred, y_true))
    ref = jax.block_until_ready(_f1_score_ref(y_pred, y_true))
    assert jnp.allclose(out, ref, atol=1e-5, rtol=1e-5), (out, ref)

    # Case 2: larger input with small tiles so the grid has multiple tiles per
    # split and both "TensorCore" splits + the accumulator loop are exercised.
    y_pred2 = jax.random.normal(k3, (2, 1, 128, 64), dtype=jnp.float32)
    y_true2 = (jax.random.uniform(k4, (2, 1, 128, 64)) > 0.5).astype(jnp.float32)
    out2 = jax.block_until_ready(f1_score(y_pred2, y_true2, max_tile_rows=8))
    ref2 = jax.block_until_ready(_f1_score_ref(y_pred2, y_true2))
    assert jnp.allclose(out2, ref2, atol=1e-5, rtol=1e-5), (out2, ref2)

    print("KERNEL_OK")
</pallas_src>

<mosaic_0001>
module attributes {stable_mosaic.version = 11 : i64} {
  func.func @f1_kernel(%arg0: i32, %arg1: i32, %arg2: memref<1x8x512xf32, #tpu.memory_space<vmem>>, %arg3: memref<1x8x512xf32, #tpu.memory_space<vmem>>, %arg4: memref<1x3x512xf32, #tpu.memory_space<vmem>>, %arg5: memref<3x512xf32, #tpu.memory_space<vmem>>) attributes {dimension_semantics = [#tpu.dimension_semantics<parallel>, #tpu.dimension_semantics<arbitrary>], iteration_bounds = array<i64: 1, 1>, scalar_prefetch = 0 : i64, scratch_operands = 1 : i64, tpu.core_type = #tpu.core_type<tc>, window_params = [{transform_indices = @transform_0, window_bounds = array<i64: 1, 8, 512>}, {transform_indices = @transform_1, window_bounds = array<i64: 1, 8, 512>}, {transform_indices = @transform_2, window_bounds = array<i64: 1, 3, 512>}]} {
    %c0_i32 = arith.constant 0 : i32
    %0 = arith.cmpi eq, %arg1, %c0_i32 : i32
    %1 = arith.extui %0 : i1 to i32
    %c0_i32_0 = arith.constant 0 : i32
    %2 = arith.cmpi ne, %1, %c0_i32_0 : i32
    scf.if %2 {
      %cst_21 = arith.constant 0.000000e+00 : f32
      %30 = vector.broadcast %cst_21 : f32 to vector<3x512xf32>
      %c0_22 = arith.constant 0 : index
      %c0_23 = arith.constant 0 : index
      %31 = vector.load %arg5[%c0_22, %c0_23] : memref<3x512xf32, #tpu.memory_space<vmem>>, vector<3x512xf32>
      tpu.vector_store %arg5[%c0_22, %c0_23], %30 {strides = array<i32>} : memref<3x512xf32, #tpu.memory_space<vmem>>, vector<3x512xf32>,
    } else {
    }
    %c0 = arith.constant 0 : index
    %c0_1 = arith.constant 0 : index
    %c0_2 = arith.constant 0 : index
    %3 = vector.load %arg2[%c0, %c0_1, %c0_2] : memref<1x8x512xf32, #tpu.memory_space<vmem>>, vector<1x8x512xf32>
    %4 = vector.shape_cast %3 : vector<1x8x512xf32> to vector<8x512xf32>
    %cst = arith.constant 0.000000e+00 : f32
    %5 = vector.broadcast %cst : f32 to vector<8x512xf32>
    %6 = arith.cmpf ogt, %4, %5 : vector<8x512xf32>
    %7 = arith.extui %6 : vector<8x512xi1> to vector<8x512xi32>
    %8 = arith.sitofp %7 : vector<8x512xi32> to vector<8x512xf32>
    %c0_3 = arith.constant 0 : index
    %c0_4 = arith.constant 0 : index
    %c0_5 = arith.constant 0 : index
    %9 = vector.load %arg3[%c0_3, %c0_4, %c0_5] : memref<1x8x512xf32, #tpu.memory_space<vmem>>, vector<1x8x512xf32>
    %10 = vector.shape_cast %9 : vector<1x8x512xf32> to vector<8x512xf32>
    %c0_6 = arith.constant 0 : index
    %c0_7 = arith.constant 0 : index
    %11 = vector.load %arg5[%c0_6, %c0_7] : memref<3x512xf32, #tpu.memory_space<vmem>>, vector<1x512xf32>
    %12 = arith.mulf %8, %10 : vector<8x512xf32>
    %cst_8 = arith.constant dense<0.000000e+00> : vector<512xf32>
    %13 = vector.multi_reduction <add>, %12, %cst_8 [0] : vector<8x512xf32> to vector<512xf32>
    %14 = vector.shape_cast %13 : vector<512xf32> to vector<1x512xf32>
    %15 = arith.addf %11, %14 : vector<1x512xf32>
    %c0_9 = arith.constant 0 : index
    %c0_10 = arith.constant 0 : index
    %16 = vector.load %arg5[%c0_9, %c0_10] : memref<3x512xf32, #tpu.memory_space<vmem>>, vector<1x512xf32>
    tpu.vector_store %arg5[%c0_9, %c0_10], %15 {strides = array<i32>} : memref<3x512xf32, #tpu.memory_space<vmem>>, vector<1x512xf32>,
    %c1 = arith.constant 1 : index
    %c0_11 = arith.constant 0 : index
    %17 = vector.load %arg5[%c1, %c0_11] : memref<3x512xf32, #tpu.memory_space<vmem>>, vector<1x512xf32>
    %cst_12 = arith.constant dense<0.000000e+00> : vector<512xf32>
    %18 = vector.multi_reduction <add>, %8, %cst_12 [0] : vector<8x512xf32> to vector<512xf32>
    %19 = vector.shape_cast %18 : vector<512xf32> to vector<1x512xf32>
    %20 = arith.addf %17, %19 : vector<1x512xf32>
    %c1_13 = arith.constant 1 : index
    %c0_14 = arith.constant 0 : index
    %21 = vector.load %arg5[%c1_13, %c0_14] : memref<3x512xf32, #tpu.memory_space<vmem>>, vector<1x512xf32>
    tpu.vector_store %arg5[%c1_13, %c0_14], %20 {strides = array<i32>} : memref<3x512xf32, #tpu.memory_space<vmem>>, vector<1x512xf32>,
    %c2 = arith.constant 2 : index
    %c0_15 = arith.constant 0 : index
    %22 = vector.load %arg5[%c2, %c0_15] : memref<3x512xf32, #tpu.memory_space<vmem>>, vector<1x512xf32>
    %cst_16 = arith.constant dense<0.000000e+00> : vector<512xf32>
    %23 = vector.multi_reduction <add>, %10, %cst_16 [0] : vector<8x512xf32> to vector<512xf32>
    %24 = vector.shape_cast %23 : vector<512xf32> to vector<1x512xf32>
    %25 = arith.addf %22, %24 : vector<1x512xf32>
    %c2_17 = arith.constant 2 : index
    %c0_18 = arith.constant 0 : index
    %26 = vector.load %arg5[%c2_17, %c0_18] : memref<3x512xf32, #tpu.memory_space<vmem>>, vector<1x512xf32>
    tpu.vector_store %arg5[%c2_17, %c0_18], %25 {strides = array<i32>} : memref<3x512xf32, #tpu.memory_space<vmem>>, vector<1x512xf32>,
    %c0_i32_19 = arith.constant 0 : i32
    %27 = arith.cmpi eq, %arg1, %c0_i32_19 : i32
    %28 = arith.extui %27 : i1 to i32
    %c0_i32_20 = arith.constant 0 : i32
    %29 = arith.cmpi ne, %28, %c0_i32_20 : i32
    scf.if %29 {
      %c0_21 = arith.constant 0 : index
      %c0_22 = arith.constant 0 : index
      %30 = vector.load %arg5[%c0_21, %c0_22] : memref<3x512xf32, #tpu.memory_space<vmem>>, vector<3x512xf32>
      %c0_23 = arith.constant 0 : index
      %c0_24 = arith.constant 0 : index
      %c0_25 = arith.constant 0 : index
      %31 = vector.load %arg4[%c0_23, %c0_24, %c0_25] : memref<1x3x512xf32, #tpu.memory_space<vmem>>, vector<1x3x512xf32>
      %32 = vector.shape_cast %31 : vector<1x3x512xf32> to vector<3x512xf32>
      %33 = vector.shape_cast %30 : vector<3x512xf32> to vector<1x3x512xf32>
      tpu.vector_store %arg4[%c0_23, %c0_24, %c0_25], %33 {strides = array<i32>} : memref<1x3x512xf32, #tpu.memory_space<vmem>>, vector<1x3x512xf32>,
    } else {
    }
    return
  }
  func.func @transform_0(%arg0: i32, %arg1: i32) -> (i32, i32, i32) {
    %c0_i32 = arith.constant 0 : i32
    %c0_i32_0 = arith.constant 0 : i32
    return %arg0, %arg1, %c0_i32 : i32, i32, i32
  }
  func.func @transform_1(%arg0: i32, %arg1: i32) -> (i32, i32, i32) {
    %c0_i32 = arith.constant 0 : i32
    %c0_i32_0 = arith.constant 0 : i32
    return %arg0, %arg1, %c0_i32 : i32, i32, i32
  }
  func.func @transform_2(%arg0: i32, %arg1: i32) -> (i32, i32, i32) {
    %c0_i32 = arith.constant 0 : i32
    %c0_i32_0 = arith.constant 0 : i32
    %c0_i32_1 = arith.constant 0 : i32
    return %arg0, %c0_i32, %c0_i32_0 : i32, i32, i32
  }
}

</mosaic_0001>

<llo_original>
// kernel: tpu_custom_call.1
$region0: #{tpu_custom_call.1}
  #allocation0 [shape = 'u32[]', space=smem, size = 0x4, offset = 0x4, fixed_abs, tag = 'smem constant byte address 0x4 - core index']
  #allocation1 [shape = 'u32[144,128]{1,0:T(1,128)}', space=vmem, size = 0x12000, scoped, tag = 'internal scratch']
  #allocation2 [shape = 'f32[3,512]{1,0:T(4,128)}', space=vmem, size = 0x2000, scoped, tag = 'scratch operand']
  %s0 = inlined_call_operand.hbm [shape: f32[1,8,512], index: 0, kind: input, shape index: {}]
  %s1 = inlined_call_operand.hbm [shape: f32[1,8,512], index: 1, kind: input, shape index: {}]
  %s2 = inlined_call_operand.vmem [shape: f32[1,3,512], index: 2, kind: output, shape index: {}]
  %s3 = sld [smem:[#allocation0]]
  $region34: #{tpu_custom_call.1} parent=0
    _
  %s5 = ssub.s32 1, %s3
  %s6 = scalar_select 0, %s5, %s3
  $region1: #{tpu_custom_call.1} parent=0
    #allocation3 [shape = 'u8[16384]{0}', space=vmem, size = 0x4000, scoped, tag = 'input window, operand 0, single buffered']
    #allocation4 [shape = 's32[1]{0}', space=sflag, size = 0x4, scoped, tag = 'scoped memory for tpu_custom_call.1']
    #allocation5 [shape = 'u8[16384]{0}', space=vmem, size = 0x4000, scoped, tag = 'input window, operand 1, single buffered']
    #allocation6 [shape = 's32[1]{0}', space=sflag, size = 0x4, scoped, tag = 'scoped memory for tpu_custom_call.1']
    %7 = vsyncpa [#allocation4], 0
    %8 = vsyncpa [#allocation6], 0
    // Predicated region
    $region2: #{tpu_custom_call.1} parent=1 // pred_check
      _
    $region3: #{tpu_custom_call.1} parent=1 // pred_check_branch
      %10 = sbr.rel (0) target = $region5
    $region4: #{tpu_custom_call.1} parent=1 // pred_region
      %s12 = ssub.s32 512, 512
      %13 = vsyncadd [#allocation4], %s12
      %s15 = sshll.u32 [#allocation3], 4
      %s16 = int_to_ptr.vmem [resolvable:$true] %s15
      %18 = dma.hbm_to_vmem [thread:$0]  %s0, 512, %s16, [#allocation4]
    $region5: #{tpu_custom_call.1} parent=1 // pred_fallthru
      _
    // Predicated region
    $region6: #{tpu_custom_call.1} parent=1 // pred_check
      _
    $region7: #{tpu_custom_call.1} parent=1 // pred_check_branch
      %20 = sbr.rel (0) target = $region9
    $region8: #{tpu_custom_call.1} parent=1 // pred_region
      %s22 = ssub.s32 512, 512
      %23 = vsyncadd [#allocation6], %s22
      %s25 = sshll.u32 [#allocation5], 4
      %s26 = int_to_ptr.vmem [resolvable:$true] %s25
      %28 = dma.hbm_to_vmem [thread:$0]  %s1, 512, %s26, [#allocation6]
    $region9: #{tpu_custom_call.1} parent=1 // pred_fallthru
      _
    // Predicated region
    $region10: #{tpu_custom_call.1} parent=1 // pred_check
      _
    $region11: #{tpu_custom_call.1} parent=1 // pred_check_branch
      %30 = sbr.rel (0) target = $region13
    $region12: #{tpu_custom_call.1} parent=1 // pred_region
      %31 = dma.done [#allocation4], 512
    $region13: #{tpu_custom_call.1} parent=1 // pred_fallthru
      _
    // Predicated region
    $region14: #{tpu_custom_call.1} parent=1 // pred_check
      _
    $region15: #{tpu_custom_call.1} parent=1 // pred_check_branch
      %33 = sbr.rel (0) target = $region17
    $region16: #{tpu_custom_call.1} parent=1 // pred_region
      %34 = dma.done [#allocation6], 512
    $region17: #{tpu_custom_call.1} parent=1 // pred_fallthru
      _
    %p35 = scmp.eq.s32.totalorder 0, 0
    // Predicated region
    $region18: #{tpu_custom_call.1} parent=1 // pred_check
      %p36 = pneg %p35
    $region19: #{tpu_custom_call.1} parent=1 // pred_check_branch
      %38 = sbr.rel (%p36) target = $region21
    $region20: #{tpu_custom_call.1} parent=1 // pred_region
      %39 = vst [vmem:[#allocation2] sm:$0x77] 0.0
      %40 = vst [vmem:[#allocation2 + $0x8] sm:$0x77] 0.0
    $region21: #{tpu_custom_call.1} parent=1 // pred_fallthru
      _
    %v41 = vld [vmem:[#allocation3] sm:$0xff]
    %v42 = vld [vmem:[#allocation3 + $0x8] sm:$0xff]
    %v43 = vld [vmem:[#allocation3 + $0x10] sm:$0xff]
    %v44 = vld [vmem:[#allocation3 + $0x18] sm:$0xff]
    %vm45 = vcmp.gt.f32.partialorder %v41, 0.0
    %vm46 = vcmp.gt.f32.partialorder %v42, 0.0
    %vm47 = vcmp.gt.f32.partialorder %v43, 0.0
    %vm48 = vcmp.gt.f32.partialorder %v44, 0.0
    %v49 = vsel %vm45, 1, 0
    %v50 = vsel %vm46, 1, 0
    %v51 = vsel %vm47, 1, 0
    %v52 = vsel %vm48, 1, 0
    %v53 = vcvt.s32.f32 %v49
    %v54 = vcvt.s32.f32 %v50
    %v55 = vcvt.s32.f32 %v51
    %v56 = vcvt.s32.f32 %v52
    %v57 = vld [vmem:[#allocation5] sm:$0xff]
    %v58 = vld [vmem:[#allocation5 + $0x8] sm:$0xff]
    %v59 = vld [vmem:[#allocation5 + $0x10] sm:$0xff]
    %v60 = vld [vmem:[#allocation5 + $0x18] sm:$0xff]
    %v61 = vld [vmem:[#allocation2] ss:$4 sm:$0xf]
    %v62 = vmul.f32 %v53, %v57
    %v63 = vmul.f32 %v54, %v58
    %v64 = vmul.f32 %v55, %v59
    %v65 = vmul.f32 %v56, %v60
    %v66 = vrot.slane %v62, 4
    %v67 = vadd.f32 %v62, %v66
    %v68 = vrot.slane %v67, 2
    %v69 = vadd.f32 %v67, %v68
    %v70 = vrot.slane %v69, 1
    %v71 = vadd.f32 %v69, %v70
    %v72 = vrot.slane %v63, 4
    %v73 = vadd.f32 %v63, %v72
    %v74 = vrot.slane %v73, 2
    %v75 = vadd.f32 %v73, %v74
    %v76 = vrot.slane %v75, 1
    %v77 = vadd.f32 %v75, %v76
    %v78 = vrot.slane %v64, 4
    %v79 = vadd.f32 %v64, %v78
    %v80 = vrot.slane %v79, 2
    %v81 = vadd.f32 %v79, %v80
    %v82 = vrot.slane %v81, 1
    %v83 = vadd.f32 %v81, %v82
    %v84 = vrot.slane %v65, 4
    %v85 = vadd.f32 %v65, %v84
    %v86 = vrot.slane %v85, 2
    %v87 = vadd.f32 %v85, %v86
    %v88 = vrot.slane %v87, 1
    %v89 = vadd.f32 %v87, %v88
    %v94 = vcombine.low %v71, %v77
    %v95 = vcombine.low %v83, %v89
    %v97 = vunpack.c.l.s4 1966171168
    %v98 = vunpack.c.0.s8 %v97
    %v99 = vlaneseq
    %v100 = vshrl.u32 %v99, 7
    %v101 = vsub.s32 %v98, %v100
    %v102 = vrot.slane %v94, %v101
    %v104 = vunpack.c.l.s4 1966171168
    %v105 = vunpack.c.0.s8 %v104
    %v106 = vlaneseq
    %v107 = vshrl.u32 %v106, 7
    %v108 = vsub.s32 %v105, %v107
    %v109 = vrot.slane %v95, %v108
    %v110 = vcombine.low %v102, %v109
    %v112 = vunpack.c.l.s4 1966171168
    %v113 = vunpack.c.0.s8 %v112
    %v114 = vlaneseq
    %v115 = vshrl.u32 %v114, 7
    %v116 = vsub.s32 %v113, %v115
    %v117 = vrot.slane %v110, %v116
    %v119 = vadd.f32 %v61, %v117
    %v120 = vlaneseq
    %vm121 = vcmp.ge.s32.totalorder %v120, 0
    %vm122 = vcmp.lt.s32.totalorder %v120, 512
    %vm123 = vmand %vm121, %vm122
    %124 = vst.msk [vmem:[#allocation2] ss:$4 sm:$0xf] %vm123, %v119
    %s125 = scalar_lea.vmem [#allocation2], 1
    %v126 = vld [vmem:[%s125] ss:$4 sm:$0xf]
    %v127 = vrot.slane %v53, 4
    %v128 = vadd.f32 %v53, %v127
    %v129 = vrot.slane %v128, 2
    %v130 = vadd.f32 %v128, %v129
    %v131 = vrot.slane %v130, 1
    %v132 = vadd.f32 %v130, %v131
    %v133 = vrot.slane %v54, 4
    %v134 = vadd.f32 %v54, %v133
    %v135 = vrot.slane %v134, 2
    %v136 = vadd.f32 %v134, %v135
    %v137 = vrot.slane %v136, 1
    %v138 = vadd.f32 %v136, %v137
    %v139 = vrot.slane %v55, 4
    %v140 = vadd.f32 %v55, %v139
    %v141 = vrot.slane %v140, 2
    %v142 = vadd.f32 %v140, %v141
    %v143 = vrot.slane %v142, 1
    %v144 = vadd.f32 %v142, %v143
    %v145 = vrot.slane %v56, 4
    %v146 = vadd.f32 %v56, %v145
    %v147 = vrot.slane %v146, 2
    %v148 = vadd.f32 %v146, %v147
    %v149 = vrot.slane %v148, 1
    %v150 = vadd.f32 %v148, %v149
    %v155 = vcombine.low %v132, %v138
    %v156 = vcombine.low %v144, %v150
    %v158 = vunpack.c.l.s4 1966171168
    %v159 = vunpack.c.0.s8 %v158
    %v160 = vlaneseq
    %v161 = vshrl.u32 %v160, 7
    %v162 = vsub.s32 %v159, %v161
    %v163 = vrot.slane %v155, %v162
    %v165 = vunpack.c.l.s4 1966171168
    %v166 = vunpack.c.0.s8 %v165
    %v167 = vlaneseq
    %v168 = vshrl.u32 %v167, 7
    %v169 = vsub.s32 %v166, %v168
    %v170 = vrot.slane %v156, %v169
    %v171 = vcombine.low %v163, %v170
    %v173 = vunpack.c.l.s4 1966171168
    %v174 = vunpack.c.0.s8 %v173
    %v175 = vlaneseq
    %v176 = vshrl.u32 %v175, 7
    %v177 = vsub.s32 %v174, %v176
    %v178 = vrot.slane %v171, %v177
    %v180 = vadd.f32 %v126, %v178
    %181 = vst.msk [vmem:[%s125] ss:$4 sm:$0xf] %vm123, %v180
    %s182 = scalar_lea.vmem [#allocation2], 2
    %v183 = vld [vmem:[%s182] ss:$4 sm:$0xf]
    %v184 = vrot.slane %v57, 4
    %v185 = vadd.f32 %v57, %v184
    %v186 = vrot.slane %v185, 2
    %v187 = vadd.f32 %v185, %v186
    %v188 = vrot.slane %v187, 1
    %v189 = vadd.f32 %v187, %v188
    %v190 = vrot.slane %v58, 4
    %v191 = vadd.f32 %v58, %v190
    %v192 = vrot.slane %v191, 2
    %v193 = vadd.f32 %v191, %v192
    %v194 = vrot.slane %v193, 1
    %v195 = vadd.f32 %v193, %v194
    %v196 = vrot.slane %v59, 4
    %v197 = vadd.f32 %v59, %v196
    %v198 = vrot.slane %v197, 2
    %v199 = vadd.f32 %v197, %v198
    %v200 = vrot.slane %v199, 1
    %v201 = vadd.f32 %v199, %v200
    %v202 = vrot.slane %v60, 4
    %v203 = vadd.f32 %v60, %v202
    %v204 = vrot.slane %v203, 2
    %v205 = vadd.f32 %v203, %v204
    %v206 = vrot.slane %v205, 1
    %v207 = vadd.f32 %v205, %v206
    %v212 = vcombine.low %v189, %v195
    %v213 = vcombine.low %v201, %v207
    %v215 = vunpack.c.l.s4 1966171168
    %v216 = vunpack.c.0.s8 %v215
    %v217 = vlaneseq
    %v218 = vshrl.u32 %v217, 7
    %v219 = vsub.s32 %v216, %v218
    %v220 = vrot.slane %v212, %v219
    %v222 = vunpack.c.l.s4 1966171168
    %v223 = vunpack.c.0.s8 %v222
    %v224 = vlaneseq
    %v225 = vshrl.u32 %v224, 7
    %v226 = vsub.s32 %v223, %v225
    %v227 = vrot.slane %v213, %v226
    %v228 = vcombine.low %v220, %v227
    %v230 = vunpack.c.l.s4 1966171168
    %v231 = vunpack.c.0.s8 %v230
    %v232 = vlaneseq
    %v233 = vshrl.u32 %v232, 7
    %v234 = vsub.s32 %v231, %v233
    %v235 = vrot.slane %v228, %v234
    %v237 = vadd.f32 %v183, %v235
    %238 = vst.msk [vmem:[%s182] ss:$4 sm:$0xf] %vm123, %v237
    // Predicated region
    $region22: #{tpu_custom_call.1} parent=1 // pred_check
      %p239 = pneg %p35
    $region23: #{tpu_custom_call.1} parent=1 // pred_check_branch
      %241 = sbr.rel (%p239) target = $region25
    $region24: #{tpu_custom_call.1} parent=1 // pred_region
      %v242 = vld [vmem:[#allocation2] sm:$0x77]
      %v243 = vld [vmem:[#allocation2 + $0x8] sm:$0x77]
      %244 = vst [vmem:[%s2] sm:$0x77] %v242
      %245 = vst [vmem:[%s2 + $0x8] sm:$0x77] %v243
    $region25: #{tpu_custom_call.1} parent=1 // pred_fallthru
      _
    // Predicated region
    $region26: #{tpu_custom_call.1} parent=1 // pred_check
      _
    $region27: #{tpu_custom_call.1} parent=1 // pred_check_branch
      %247 = sbr.rel (0) target = $region29
    $region28: #{tpu_custom_call.1} parent=1 // pred_region
      _
    $region29: #{tpu_custom_call.1} parent=1 // pred_fallthru
      _
    // Predicated region
    $region30: #{tpu_custom_call.1} parent=1 // pred_check
      _
    $region31: #{tpu_custom_call.1} parent=1 // pred_check_branch
      %249 = sbr.rel (0) target = $region33
    $region32: #{tpu_custom_call.1} parent=1 // pred_region
      _
    $region33: #{tpu_custom_call.1} parent=1 // pred_fallthru
      _
    %250 = vsyncpa [#allocation4], 1
    %251 = vsyncpa [#allocation6], 1

</llo_original>
